<compile_context>
chip_gen: v6e
topology: v6e:2x2x1
jax: 0.10.0
libtpu: 0.0.40
codegen_flags: <defaults>
</compile_context>

<pallas_src>
import functools

import jax
import jax.numpy as jnp
from jax.experimental import pallas as pl
from jax.experimental.pallas import tpu as pltpu


def _rnn_chunk_kernel(xp_ref, h0_ref, w_hh_ref, w_fc_ref, b_fc_ref,
                      y_ref, hn_ref, h_carry, h_all,
                      *, b_pad, t_chunk, fc_block, last_row, matmul_dtype, unroll):
    """One T-chunk of the recurrence.

    xp_ref  : (t_chunk*b_pad, H_pad) f32   precomputed x@W_ih^T + b_ih + b_hh (time-major)
    h0_ref  : (b_pad, H_pad) f32
    w_hh_ref: (H_pad, H_pad) matmul_dtype  pre-transposed, kernel computes h @ W
    w_fc_ref: (H_pad, O_pad) matmul_dtype, b_fc_ref: (1, O_pad) f32
    y_ref   : (t_chunk*b_pad, O_pad) f32
    hn_ref  : (b_pad, H_pad) f32
    h_carry : VMEM (b_pad, H_pad) f32            hidden state carried across chunks
    h_all   : VMEM (t_chunk*b_pad, H_pad) f32    per-chunk hidden-state slab for the FC head
    """
    c = pl.program_id(0)

    @pl.when(c == 0)
    def _():
        h_carry[...] = h0_ref[...]

    # Constant index_map -> these stay VMEM-resident across grid steps.  W_hh is already
    # stored in matmul_dtype (bf16 by default): 8 vregs instead of 16 when hoisted.
    w_hh = w_hh_ref[...]
    w_fc = w_fc_ref[...]
    b_fc = b_fc_ref[...]

    def make_step(base):
        def step(t, h_prev):
            row = pl.multiple_of((base + t) * b_pad, b_pad)
            x_t = xp_ref[pl.ds(row, b_pad), :]                    # (b_pad, H_pad) f32
            # Only the MXU operands are cast; the add + tanh stay f32 (v5e VPU/EUP
            # have no bf16).  No padding mask on the serial chain any more.
            h_new = jnp.tanh(
                x_t + jnp.dot(h_prev.astype(matmul_dtype), w_hh,
                              preferred_element_type=jnp.float32))
            h_all[pl.ds(row, b_pad), :] = h_new
            return h_new
        return step

    h = h_carry[...]
    # Interleave the FC head with the recurrence: after every fc_block finished steps,
    # issue the (fc_block*b_pad, H) @ (H, O) matmul on the already-written slab rows.
    # It has no dependence on the following serial steps, so the MXU work is hidden.
    for base in range(0, t_chunk, fc_block):
        blen = min(fc_block, t_chunk - base)
        h = jax.lax.fori_loop(0, blen, make_step(base), h, unroll=unroll)
        r0 = base * b_pad
        nrows = blen * b_pad
        y_ref[pl.ds(r0, nrows), :] = (
            jnp.dot(h_all[pl.ds(r0, nrows), :].astype(matmul_dtype), w_fc,
                    preferred_element_type=jnp.float32) + b_fc
        ).astype(y_ref.dtype)

    h_carry[...] = h

    @pl.when(c == pl.num_programs(0) - 1)
    def _():
        # hn = hidden state after the last REAL time step, read back from the slab
        # (last_row is a static row offset computed in the wrapper).
        hn_ref[...] = h_all[pl.ds(last_row, b_pad), :].astype(hn_ref.dtype)


def _pad_to(n, m):
    return ((n + m - 1) // m) * m


@functools.partial(jax.jit, static_argnames=("matmul_dtype",))
def simple_rnn_forward(x, h0, w_ih, w_hh, b_ih, b_hh, w_fc, b_fc,
                       matmul_dtype=jnp.bfloat16):
    """x: (B, T, I) f32, h0: (1, B, H) f32.  Returns (y: (B, T, O), hn: (1, B, H))."""
    B, T, I = x.shape
    H = w_ih.shape[0]
    O = w_fc.shape[0]

    B_pad = _pad_to(max(B, 8), 8)
    H_pad = _pad_to(max(H, 128), 128)
    O_pad = _pad_to(max(O, 128), 128)

    # Adaptive chunking: whole sequence for T <= 256; otherwise near-equal chunks of at
    # most 256 steps, so the padded tail adds at most (num_chunks - 1) dead serial steps.
    MAX_CHUNK = 256
    num_chunks = -(-T // MAX_CHUNK)
    T_chunk = -(-T // num_chunks)
    T_pad = num_chunks * T_chunk
    unroll = True if T_chunk <= 32 else 4
    FC_BLOCK = 64

    # Hoisted input projection, produced directly in the padded (T_pad, B_pad, H_pad)
    # layout: pad the SMALL operands before the einsum instead of copying the activation.
    x_p = jnp.pad(x, ((0, B_pad - B), (0, T_pad - T), (0, 0)))            # (B_pad, T_pad, I)
    w_ih_p = jnp.pad(w_ih, ((0, H_pad - H), (0, 0)))                      # (H_pad, I)
    b_p = jnp.pad(b_ih + b_hh, ((0, H_pad - H),))                         # (H_pad,)
    xp_p = (jnp.einsum("bti,hi->tbh", x_p, w_ih_p) + b_p).reshape(T_pad * B_pad, H_pad)

    h0_p = jnp.zeros((B_pad, H_pad), jnp.float32).at[:B, :H].set(h0[0])

    # Pre-transposed weights in matmul_dtype (bf16 by default): single-pass MXU per step.
    w_hh_p = (jnp.zeros((H_pad, H_pad), jnp.float32).at[:H, :H]
              .set(w_hh.T).astype(matmul_dtype))
    w_fc_p = (jnp.zeros((H_pad, O_pad), jnp.float32).at[:H, :O]
              .set(w_fc.T).astype(matmul_dtype))
    b_fc_p = jnp.zeros((1, O_pad), jnp.float32).at[0, :O].set(b_fc)

    # Row (within the last chunk's slab) of the hidden state after the last REAL step.
    last_row = ((T - 1) % T_chunk) * B_pad

    kernel = functools.partial(
        _rnn_chunk_kernel, b_pad=B_pad, t_chunk=T_chunk, fc_block=FC_BLOCK,
        last_row=last_row, matmul_dtype=matmul_dtype, unroll=unroll)

    rows_per_chunk = T_chunk * B_pad
    const2d = lambda shape: pl.BlockSpec(shape, lambda c: (0, 0))

    y_p, hn_p = pl.pallas_call(
        kernel,
        out_shape=(
            jax.ShapeDtypeStruct((T_pad * B_pad, O_pad), jnp.float32),
            jax.ShapeDtypeStruct((B_pad, H_pad), jnp.float32),
        ),
        grid_spec=pltpu.PrefetchScalarGridSpec(
            num_scalar_prefetch=0,
            grid=(num_chunks,),
            in_specs=[
                pl.BlockSpec((rows_per_chunk, H_pad), lambda c: (c, 0)),   # xp chunk
                const2d((B_pad, H_pad)),                                   # h0
                const2d((H_pad, H_pad)),                                   # W_hh^T
                const2d((H_pad, O_pad)),                                   # W_fc^T
                const2d((1, O_pad)),                                       # b_fc
            ],
            out_specs=[
                pl.BlockSpec((rows_per_chunk, O_pad), lambda c: (c, 0)),   # y chunk
                const2d((B_pad, H_pad)),                                   # hn (resident)
            ],
            scratch_shapes=[
                pltpu.VMEM((B_pad, H_pad), jnp.float32),           # h carried across chunks
                pltpu.VMEM((rows_per_chunk, H_pad), jnp.float32),  # per-chunk hidden slab
            ],
        ),
        compiler_params=pltpu.CompilerParams(
            dimension_semantics=("arbitrary",),    # chunks are sequential (recurrence)
        ),
    )(xp_p, h0_p, w_hh_p, w_fc_p, b_fc_p)

    y = jnp.transpose(
        y_p.reshape(T_pad, B_pad, O_pad)[:T, :B, :O], (1, 0, 2))           # (B, T, O)
    hn = hn_p[:B, :H][None]                                                # (1, B, H)
    return y, hn


def _reference_forward(x, h0, w_ih, w_hh, b_ih, b_hh, w_fc, b_fc):
    B, T, I = x.shape
    h = h0[0]
    outs = []
    for t in range(T):
        h = jnp.tanh(x[:, t, :] @ w_ih.T + b_ih + h @ w_hh.T + b_hh)
        outs.append(h)
    out = jnp.stack(outs, axis=1)
    y = out @ w_fc.T + b_fc
    return y, h[None]


if __name__ == "__main__":
    # Module config: input_size=3, hidden_size=100, output_size=3.
    input_size, hidden_size, output_size = 3, 100, 3
    batch, seq = 2, 8

    key = jax.random.PRNGKey(0)
    ks = jax.random.split(key, 8)
    scale = 1.0 / jnp.sqrt(hidden_size)

    # Deterministic synthetic parameters (PyTorch-default-like uniform init).
    w_ih = jax.random.uniform(ks[0], (hidden_size, input_size), jnp.float32, -scale, scale)
    w_hh = jax.random.uniform(ks[1], (hidden_size, hidden_size), jnp.float32, -scale, scale)
    b_ih = jax.random.uniform(ks[2], (hidden_size,), jnp.float32, -scale, scale)
    b_hh = jax.random.uniform(ks[3], (hidden_size,), jnp.float32, -scale, scale)
    w_fc = jax.random.uniform(ks[4], (output_size, hidden_size), jnp.float32, -scale, scale)
    b_fc = jax.random.uniform(ks[5], (output_size,), jnp.float32, -scale, scale)

    x = jax.random.normal(ks[6], (batch, seq, input_size), jnp.float32)
    h0 = jnp.zeros((1, batch, hidden_size), jnp.float32)   # PyTorch default h0=None -> zeros

    y_ref, hn_ref = _reference_forward(x, h0, w_ih, w_hh, b_ih, b_hh, w_fc, b_fc)

    # Exact path (f32 MXU operands) - tight tolerance.
    y32, hn32 = simple_rnn_forward(x, h0, w_ih, w_hh, b_ih, b_hh, w_fc, b_fc,
                                   matmul_dtype=jnp.float32)
    jax.block_until_ready((y32, hn32))
    assert y32.shape == (batch, seq, output_size)
    assert hn32.shape == (1, batch, hidden_size)
    assert jnp.allclose(y32, y_ref, rtol=1e-4, atol=1e-4)
    assert jnp.allclose(hn32, hn_ref, rtol=1e-4, atol=1e-4)

    # Fast path (default: bf16 MXU operands, f32 accumulation / elementwise) - bf16 tolerance.
    y, hn = simple_rnn_forward(x, h0, w_ih, w_hh, b_ih, b_hh, w_fc, b_fc)
    jax.block_until_ready((y, hn))
    assert y.shape == (batch, seq, output_size)
    assert hn.shape == (1, batch, hidden_size)
    assert jnp.allclose(y, y_ref, rtol=2e-2, atol=2e-2)
    assert jnp.allclose(hn, hn_ref, rtol=2e-2, atol=2e-2)

    print("KERNEL_OK")
</pallas_src>

<mosaic_0001>
module attributes {stable_mosaic.version = 11 : i64} {
  func.func @_rnn_chunk_kernel(%arg0: i32, %arg1: memref<64x128xf32, #tpu.memory_space<vmem>>, %arg2: memref<8x128xf32, #tpu.memory_space<vmem>>, %arg3: memref<128x128xf32, #tpu.memory_space<vmem>>, %arg4: memref<128x128xf32, #tpu.memory_space<vmem>>, %arg5: memref<1x128xf32, #tpu.memory_space<vmem>>, %arg6: memref<64x128xf32, #tpu.memory_space<vmem>>, %arg7: memref<8x128xf32, #tpu.memory_space<vmem>>, %arg8: memref<8x128xf32, #tpu.memory_space<vmem>>, %arg9: memref<64x128xf32, #tpu.memory_space<vmem>>) attributes {dimension_semantics = [#tpu.dimension_semantics<arbitrary>], iteration_bounds = array<i64: 1>, scalar_prefetch = 0 : i64, scratch_operands = 2 : i64, tpu.core_type = #tpu.core_type<tc>, window_params = [{transform_indices = @transform_0, window_bounds = array<i64: 64, 128>}, {pipeline_mode = #tpu.pipeline_mode<synchronous>, transform_indices = @transform_1, window_bounds = array<i64: 8, 128>}, {pipeline_mode = #tpu.pipeline_mode<synchronous>, transform_indices = @transform_2, window_bounds = array<i64: 128, 128>}, {pipeline_mode = #tpu.pipeline_mode<synchronous>, transform_indices = @transform_3, window_bounds = array<i64: 128, 128>}, {pipeline_mode = #tpu.pipeline_mode<synchronous>, transform_indices = @transform_4, window_bounds = array<i64: 1, 128>}, {transform_indices = @transform_5, window_bounds = array<i64: 64, 128>}, {pipeline_mode = #tpu.pipeline_mode<synchronous>, transform_indices = @transform_6, window_bounds = array<i64: 8, 128>}]} {
    %c0_i32 = arith.constant 0 : i32
    %0 = arith.cmpi eq, %arg0, %c0_i32 : i32
    %1 = arith.extui %0 : i1 to i32
    %c0_i32_0 = arith.constant 0 : i32
    %2 = arith.cmpi ne, %1, %c0_i32_0 : i32
    scf.if %2 {
      %c0_57 = arith.constant 0 : index
      %c0_58 = arith.constant 0 : index
      %96 = vector.load %arg2[%c0_57, %c0_58] : memref<8x128xf32, #tpu.memory_space<vmem>>, vector<8x128xf32>
      %c0_59 = arith.constant 0 : index
      %c0_60 = arith.constant 0 : index
      %97 = vector.load %arg8[%c0_59, %c0_60] : memref<8x128xf32, #tpu.memory_space<vmem>>, vector<8x128xf32>
      tpu.vector_store %arg8[%c0_59, %c0_60], %96 {strides = array<i32>} : memref<8x128xf32, #tpu.memory_space<vmem>>, vector<8x128xf32>,
    } else {
    }
    %c0 = arith.constant 0 : index
    %c0_1 = arith.constant 0 : index
    %3 = vector.load %arg3[%c0, %c0_1] : memref<128x128xf32, #tpu.memory_space<vmem>>, vector<128x128xf32>
    %c0_2 = arith.constant 0 : index
    %c0_3 = arith.constant 0 : index
    %4 = vector.load %arg4[%c0_2, %c0_3] : memref<128x128xf32, #tpu.memory_space<vmem>>, vector<128x128xf32>
    %c0_4 = arith.constant 0 : index
    %c0_5 = arith.constant 0 : index
    %5 = vector.load %arg5[%c0_4, %c0_5] : memref<1x128xf32, #tpu.memory_space<vmem>>, vector<1x128xf32>
    %c0_6 = arith.constant 0 : index
    %c0_7 = arith.constant 0 : index
    %6 = vector.load %arg8[%c0_6, %c0_7] : memref<8x128xf32, #tpu.memory_space<vmem>>, vector<8x128xf32>
    %c0_i32_8 = arith.constant 0 : i32
    %c0_i32_9 = arith.constant 0 : i32
    %7 = arith.addi %c0_i32_9, %c0_i32_8 : i32
    %c8_i32 = arith.constant 8 : i32
    %8 = arith.muli %7, %c8_i32 : i32
    %9 = tpu.assume_multiple %8, 8 : i32
    %10 = arith.index_cast %9 : i32 to index
    %c0_10 = arith.constant 0 : index
    %11 = vector.load %arg1[%10, %c0_10] : memref<64x128xf32, #tpu.memory_space<vmem>>, vector<8x128xf32>
    %cst = arith.constant dense<0.000000e+00> : vector<8x128xf32>
    %12 = tpu.matmul %6, %3, %cst {dimension_numbers = #tpu.dot_dimension_numbers<[1], [0], [0], [1], [0, 0, 1, 1], [], []>} : vector<8x128xf32>, vector<128x128xf32>, vector<8x128xf32> -> vector<8x128xf32>
    %13 = arith.addf %11, %12 : vector<8x128xf32>
    %14 = math.tanh %13 : vector<8x128xf32>
    %15 = arith.index_cast %9 : i32 to index
    %c0_11 = arith.constant 0 : index
    %16 = vector.load %arg9[%15, %c0_11] : memref<64x128xf32, #tpu.memory_space<vmem>>, vector<8x128xf32>
    tpu.vector_store %arg9[%15, %c0_11], %14 {strides = array<i32>} : memref<64x128xf32, #tpu.memory_space<vmem>>, vector<8x128xf32>,
    %c1_i32 = arith.constant 1 : i32
    %c0_i32_12 = arith.constant 0 : i32
    %17 = arith.addi %c0_i32_12, %c1_i32 : i32
    %c8_i32_13 = arith.constant 8 : i32
    %18 = arith.muli %17, %c8_i32_13 : i32
    %19 = tpu.assume_multiple %18, 8 : i32
    %20 = arith.index_cast %19 : i32 to index
    %c0_14 = arith.constant 0 : index
    %21 = vector.load %arg1[%20, %c0_14] : memref<64x128xf32, #tpu.memory_space<vmem>>, vector<8x128xf32>
    %cst_15 = arith.constant dense<0.000000e+00> : vector<8x128xf32>
    %22 = tpu.matmul %14, %3, %cst_15 {dimension_numbers = #tpu.dot_dimension_numbers<[1], [0], [0], [1], [0, 0, 1, 1], [], []>} : vector<8x128xf32>, vector<128x128xf32>, vector<8x128xf32> -> vector<8x128xf32>
    %23 = arith.addf %21, %22 : vector<8x128xf32>
    %24 = math.tanh %23 : vector<8x128xf32>
    %25 = arith.index_cast %19 : i32 to index
    %c0_16 = arith.constant 0 : index
    %26 = vector.load %arg9[%25, %c0_16] : memref<64x128xf32, #tpu.memory_space<vmem>>, vector<8x128xf32>
    tpu.vector_store %arg9[%25, %c0_16], %24 {strides = array<i32>} : memref<64x128xf32, #tpu.memory_space<vmem>>, vector<8x128xf32>,
    %c2_i32 = arith.constant 2 : i32
    %c0_i32_17 = arith.constant 0 : i32
    %27 = arith.addi %c0_i32_17, %c2_i32 : i32
    %c8_i32_18 = arith.constant 8 : i32
    %28 = arith.muli %27, %c8_i32_18 : i32
    %29 = tpu.assume_multiple %28, 8 : i32
    %30 = arith.index_cast %29 : i32 to index
    %c0_19 = arith.constant 0 : index
    %31 = vector.load %arg1[%30, %c0_19] : memref<64x128xf32, #tpu.memory_space<vmem>>, vector<8x128xf32>
    %cst_20 = arith.constant dense<0.000000e+00> : vector<8x128xf32>
    %32 = tpu.matmul %24, %3, %cst_20 {dimension_numbers = #tpu.dot_dimension_numbers<[1], [0], [0], [1], [0, 0, 1, 1], [], []>} : vector<8x128xf32>, vector<128x128xf32>, vector<8x128xf32> -> vector<8x128xf32>
    %33 = arith.addf %31, %32 : vector<8x128xf32>
    %34 = math.tanh %33 : vector<8x128xf32>
    %35 = arith.index_cast %29 : i32 to index
    %c0_21 = arith.constant 0 : index
    %36 = vector.load %arg9[%35, %c0_21] : memref<64x128xf32, #tpu.memory_space<vmem>>, vector<8x128xf32>
    tpu.vector_store %arg9[%35, %c0_21], %34 {strides = array<i32>} : memref<64x128xf32, #tpu.memory_space<vmem>>, vector<8x128xf32>,
    %c3_i32 = arith.constant 3 : i32
    %c0_i32_22 = arith.constant 0 : i32
    %37 = arith.addi %c0_i32_22, %c3_i32 : i32
    %c8_i32_23 = arith.constant 8 : i32
    %38 = arith.muli %37, %c8_i32_23 : i32
    %39 = tpu.assume_multiple %38, 8 : i32
    %40 = arith.index_cast %39 : i32 to index
    %c0_24 = arith.constant 0 : index
    %41 = vector.load %arg1[%40, %c0_24] : memref<64x128xf32, #tpu.memory_space<vmem>>, vector<8x128xf32>
    %cst_25 = arith.constant dense<0.000000e+00> : vector<8x128xf32>
    %42 = tpu.matmul %34, %3, %cst_25 {dimension_numbers = #tpu.dot_dimension_numbers<[1], [0], [0], [1], [0, 0, 1, 1], [], []>} : vector<8x128xf32>, vector<128x128xf32>, vector<8x128xf32> -> vector<8x128xf32>
    %43 = arith.addf %41, %42 : vector<8x128xf32>
    %44 = math.tanh %43 : vector<8x128xf32>
    %45 = arith.index_cast %39 : i32 to index
    %c0_26 = arith.constant 0 : index
    %46 = vector.load %arg9[%45, %c0_26] : memref<64x128xf32, #tpu.memory_space<vmem>>, vector<8x128xf32>
    tpu.vector_store %arg9[%45, %c0_26], %44 {strides = array<i32>} : memref<64x128xf32, #tpu.memory_space<vmem>>, vector<8x128xf32>,
    %c4_i32 = arith.constant 4 : i32
    %c0_i32_27 = arith.constant 0 : i32
    %47 = arith.addi %c0_i32_27, %c4_i32 : i32
    %c8_i32_28 = arith.constant 8 : i32
    %48 = arith.muli %47, %c8_i32_28 : i32
    %49 = tpu.assume_multiple %48, 8 : i32
    %50 = arith.index_cast %49 : i32 to index
    %c0_29 = arith.constant 0 : index
    %51 = vector.load %arg1[%50, %c0_29] : memref<64x128xf32, #tpu.memory_space<vmem>>, vector<8x128xf32>
    %cst_30 = arith.constant dense<0.000000e+00> : vector<8x128xf32>
    %52 = tpu.matmul %44, %3, %cst_30 {dimension_numbers = #tpu.dot_dimension_numbers<[1], [0], [0], [1], [0, 0, 1, 1], [], []>} : vector<8x128xf32>, vector<128x128xf32>, vector<8x128xf32> -> vector<8x128xf32>
    %53 = arith.addf %51, %52 : vector<8x128xf32>
    %54 = math.tanh %53 : vector<8x128xf32>
    %55 = arith.index_cast %49 : i32 to index
    %c0_31 = arith.constant 0 : index
    %56 = vector.load %arg9[%55, %c0_31] : memref<64x128xf32, #tpu.memory_space<vmem>>, vector<8x128xf32>
    tpu.vector_store %arg9[%55, %c0_31], %54 {strides = array<i32>} : memref<64x128xf32, #tpu.memory_space<vmem>>, vector<8x128xf32>,
    %c5_i32 = arith.constant 5 : i32
    %c0_i32_32 = arith.constant 0 : i32
    %57 = arith.addi %c0_i32_32, %c5_i32 : i32
    %c8_i32_33 = arith.constant 8 : i32
    %58 = arith.muli %57, %c8_i32_33 : i32
    %59 = tpu.assume_multiple %58, 8 : i32
    %60 = arith.index_cast %59 : i32 to index
    %c0_34 = arith.constant 0 : index
    %61 = vector.load %arg1[%60, %c0_34] : memref<64x128xf32, #tpu.memory_space<vmem>>, vector<8x128xf32>
    %cst_35 = arith.constant dense<0.000000e+00> : vector<8x128xf32>
    %62 = tpu.matmul %54, %3, %cst_35 {dimension_numbers = #tpu.dot_dimension_numbers<[1], [0], [0], [1], [0, 0, 1, 1], [], []>} : vector<8x128xf32>, vector<128x128xf32>, vector<8x128xf32> -> vector<8x128xf32>
    %63 = arith.addf %61, %62 : vector<8x128xf32>
    %64 = math.tanh %63 : vector<8x128xf32>
    %65 = arith.index_cast %59 : i32 to index
    %c0_36 = arith.constant 0 : index
    %66 = vector.load %arg9[%65, %c0_36] : memref<64x128xf32, #tpu.memory_space<vmem>>, vector<8x128xf32>
    tpu.vector_store %arg9[%65, %c0_36], %64 {strides = array<i32>} : memref<64x128xf32, #tpu.memory_space<vmem>>, vector<8x128xf32>,
    %c6_i32 = arith.constant 6 : i32
    %c0_i32_37 = arith.constant 0 : i32
    %67 = arith.addi %c0_i32_37, %c6_i32 : i32
    %c8_i32_38 = arith.constant 8 : i32
    %68 = arith.muli %67, %c8_i32_38 : i32
    %69 = tpu.assume_multiple %68, 8 : i32
    %70 = arith.index_cast %69 : i32 to index
    %c0_39 = arith.constant 0 : index
    %71 = vector.load %arg1[%70, %c0_39] : memref<64x128xf32, #tpu.memory_space<vmem>>, vector<8x128xf32>
    %cst_40 = arith.constant dense<0.000000e+00> : vector<8x128xf32>
    %72 = tpu.matmul %64, %3, %cst_40 {dimension_numbers = #tpu.dot_dimension_numbers<[1], [0], [0], [1], [0, 0, 1, 1], [], []>} : vector<8x128xf32>, vector<128x128xf32>, vector<8x128xf32> -> vector<8x128xf32>
    %73 = arith.addf %71, %72 : vector<8x128xf32>
    %74 = math.tanh %73 : vector<8x128xf32>
    %75 = arith.index_cast %69 : i32 to index
    %c0_41 = arith.constant 0 : index
    %76 = vector.load %arg9[%75, %c0_41] : memref<64x128xf32, #tpu.memory_space<vmem>>, vector<8x128xf32>
    tpu.vector_store %arg9[%75, %c0_41], %74 {strides = array<i32>} : memref<64x128xf32, #tpu.memory_space<vmem>>, vector<8x128xf32>,
    %c7_i32 = arith.constant 7 : i32
    %c0_i32_42 = arith.constant 0 : i32
    %77 = arith.addi %c0_i32_42, %c7_i32 : i32
    %c8_i32_43 = arith.constant 8 : i32
    %78 = arith.muli %77, %c8_i32_43 : i32
    %79 = tpu.assume_multiple %78, 8 : i32
    %80 = arith.index_cast %79 : i32 to index
    %c0_44 = arith.constant 0 : index
    %81 = vector.load %arg1[%80, %c0_44] : memref<64x128xf32, #tpu.memory_space<vmem>>, vector<8x128xf32>
    %cst_45 = arith.constant dense<0.000000e+00> : vector<8x128xf32>
    %82 = tpu.matmul %74, %3, %cst_45 {dimension_numbers = #tpu.dot_dimension_numbers<[1], [0], [0], [1], [0, 0, 1, 1], [], []>} : vector<8x128xf32>, vector<128x128xf32>, vector<8x128xf32> -> vector<8x128xf32>
    %83 = arith.addf %81, %82 : vector<8x128xf32>
    %84 = math.tanh %83 : vector<8x128xf32>
    %85 = arith.index_cast %79 : i32 to index
    %c0_46 = arith.constant 0 : index
    %86 = vector.load %arg9[%85, %c0_46] : memref<64x128xf32, #tpu.memory_space<vmem>>, vector<8x128xf32>
    tpu.vector_store %arg9[%85, %c0_46], %84 {strides = array<i32>} : memref<64x128xf32, #tpu.memory_space<vmem>>, vector<8x128xf32>,
    %c8_i32_47 = arith.constant 8 : i32
    %c0_48 = arith.constant 0 : index
    %c0_49 = arith.constant 0 : index
    %87 = vector.load %arg9[%c0_48, %c0_49] : memref<64x128xf32, #tpu.memory_space<vmem>>, vector<64x128xf32>
    %cst_50 = arith.constant dense<0.000000e+00> : vector<64x128xf32>
    %88 = tpu.matmul %87, %4, %cst_50 {dimension_numbers = #tpu.dot_dimension_numbers<[1], [0], [0], [1], [0, 0, 1, 1], [], []>} : vector<64x128xf32>, vector<128x128xf32>, vector<64x128xf32> -> vector<64x128xf32>
    %89 = vector.broadcast %5 : vector<1x128xf32> to vector<64x128xf32>
    %90 = arith.addf %88, %89 : vector<64x128xf32>
    %c0_51 = arith.constant 0 : index
    %c0_52 = arith.constant 0 : index
    %91 = vector.load %arg6[%c0_51, %c0_52] : memref<64x128xf32, #tpu.memory_space<vmem>>, vector<64x128xf32>
    tpu.vector_store %arg6[%c0_51, %c0_52], %90 {strides = array<i32>} : memref<64x128xf32, #tpu.memory_space<vmem>>, vector<64x128xf32>,
    %c0_53 = arith.constant 0 : index
    %c0_54 = arith.constant 0 : index
    %92 = vector.load %arg8[%c0_53, %c0_54] : memref<8x128xf32, #tpu.memory_space<vmem>>, vector<8x128xf32>
    tpu.vector_store %arg8[%c0_53, %c0_54], %84 {strides = array<i32>} : memref<8x128xf32, #tpu.memory_space<vmem>>, vector<8x128xf32>,
    %c0_i32_55 = arith.constant 0 : i32
    %93 = arith.cmpi eq, %arg0, %c0_i32_55 : i32
    %94 = arith.extui %93 : i1 to i32
    %c0_i32_56 = arith.constant 0 : i32
    %95 = arith.cmpi ne, %94, %c0_i32_56 : i32
    scf.if %95 {
      %c56 = arith.constant 56 : index
      %c0_57 = arith.constant 0 : index
      %96 = vector.load %arg9[%c56, %c0_57] : memref<64x128xf32, #tpu.memory_space<vmem>>, vector<8x128xf32>
      %c0_58 = arith.constant 0 : index
      %c0_59 = arith.constant 0 : index
      %97 = vector.load %arg7[%c0_58, %c0_59] : memref<8x128xf32, #tpu.memory_space<vmem>>, vector<8x128xf32>
      tpu.vector_store %arg7[%c0_58, %c0_59], %96 {strides = array<i32>} : memref<8x128xf32, #tpu.memory_space<vmem>>, vector<8x128xf32>,
    } else {
    }
    return
  }
  func.func @transform_0(%arg0: i32) -> (i32, i32) {
    %c0_i32 = arith.constant 0 : i32
    %c0_i32_0 = arith.constant 0 : i32
    return %arg0, %c0_i32 : i32, i32
  }
  func.func @transform_1(%arg0: i32) -> (i32, i32) {
    %c0_i32 = arith.constant 0 : i32
    %c0_i32_0 = arith.constant 0 : i32
    %c0_i32_1 = arith.constant 0 : i32
    return %c0_i32, %c0_i32_0 : i32, i32
  }
  func.func @transform_2(%arg0: i32) -> (i32, i32) {
    %c0_i32 = arith.constant 0 : i32
    %c0_i32_0 = arith.constant 0 : i32
    %c0_i32_1 = arith.constant 0 : i32
    return %c0_i32, %c0_i32_0 : i32, i32
  }
  func.func @transform_3(%arg0: i32) -> (i32, i32) {
    %c0_i32 = arith.constant 0 : i32
    %c0_i32_0 = arith.constant 0 : i32
    %c0_i32_1 = arith.constant 0 : i32
    return %c0_i32, %c0_i32_0 : i32, i32
  }
  func.func @transform_4(%arg0: i32) -> (i32, i32) {
    %c0_i32 = arith.constant 0 : i32
    %c0_i32_0 = arith.constant 0 : i32
    %c0_i32_1 = arith.constant 0 : i32
    return %c0_i32, %c0_i32_0 : i32, i32
  }
  func.func @transform_5(%arg0: i32) -> (i32, i32) {
    %c0_i32 = arith.constant 0 : i32
    %c0_i32_0 = arith.constant 0 : i32
    return %arg0, %c0_i32 : i32, i32
  }
  func.func @transform_6(%arg0: i32) -> (i32, i32) {
    %c0_i32 = arith.constant 0 : i32
    %c0_i32_0 = arith.constant 0 : i32
    %c0_i32_1 = arith.constant 0 : i32
    return %c0_i32, %c0_i32_0 : i32, i32
  }
}

</mosaic_0001>

<llo_original>
// kernel: simple_rnn_forward.1
$region0: #{simple_rnn_forward.1}
  #allocation0 [shape = 'u32[]', space=smem, size = 0x4, offset = 0x4, fixed_abs, tag = 'smem constant byte address 0x4 - core index']
  #allocation1 [shape = 'u32[144,128]{1,0:T(1,128)}', space=vmem, size = 0x12000, scoped, tag = 'internal scratch']
  #allocation2 [shape = 'f32[8,128]{1,0:T(8,128)}', space=vmem, size = 0x1000, scoped, tag = 'scratch operand']
  #allocation3 [shape = 'f32[64,128]{1,0:T(8,128)}', space=vmem, size = 0x8000, scoped, tag = 'scratch operand']
  %s0 = inlined_call_operand.vmem [shape: f32[64,128], index: 0, kind: input, shape index: {}]
  %s1 = inlined_call_operand.vmem [shape: f32[8,128], index: 1, kind: input, shape index: {}]
  %s2 = inlined_call_operand.vmem [shape: f32[128,128], index: 2, kind: input, shape index: {}]
  %s3 = inlined_call_operand.vmem [shape: f32[128,128], index: 3, kind: input, shape index: {}]
  %s4 = inlined_call_operand.vmem [shape: f32[1,128], index: 4, kind: input, shape index: {}]
  %s5 = inlined_call_operand.vmem [shape: f32[64,128], index: 5, kind: output, shape index: {0}]
  %s6 = inlined_call_operand.vmem [shape: f32[8,128], index: 6, kind: output, shape index: {1}]
  %7 = xla_tuple %s5, %s6
  %s8 = sld [smem:[#allocation0]]
  $region46: #{simple_rnn_forward.1} parent=0
    _
  %s10 = ssub.s32 1, %s8
  %s11 = scalar_select 0, %s10, %s8
  // Predicated region
  $region2: #{simple_rnn_forward.1} parent=0 // pred_check
    _
  $region3: #{simple_rnn_forward.1} parent=0 // pred_check_branch
    %13 = sbr.rel (0) target = $region5
  $region4: #{simple_rnn_forward.1} parent=0 // pred_region
    _
  $region5: #{simple_rnn_forward.1} parent=0 // pred_fallthru
    _
  // Predicated region
  $region6: #{simple_rnn_forward.1} parent=0 // pred_check
    _
  $region7: #{simple_rnn_forward.1} parent=0 // pred_check_branch
    %15 = sbr.rel (0) target = $region9
  $region8: #{simple_rnn_forward.1} parent=0 // pred_region
    _
  $region9: #{simple_rnn_forward.1} parent=0 // pred_fallthru
    _
  // Predicated region
  $region10: #{simple_rnn_forward.1} parent=0 // pred_check
    _
  $region11: #{simple_rnn_forward.1} parent=0 // pred_check_branch
    %17 = sbr.rel (0) target = $region13
  $region12: #{simple_rnn_forward.1} parent=0 // pred_region
    _
  $region13: #{simple_rnn_forward.1} parent=0 // pred_fallthru
    _
  // Predicated region
  $region14: #{simple_rnn_forward.1} parent=0 // pred_check
    _
  $region15: #{simple_rnn_forward.1} parent=0 // pred_check_branch
    %19 = sbr.rel (0) target = $region17
  $region16: #{simple_rnn_forward.1} parent=0 // pred_region
    _
  $region17: #{simple_rnn_forward.1} parent=0 // pred_fallthru
    _
  // Predicated region
  $region18: #{simple_rnn_forward.1} parent=0 // pred_check
    _
  $region19: #{simple_rnn_forward.1} parent=0 // pred_check_branch
    %21 = sbr.rel (0) target = $region21
  $region20: #{simple_rnn_forward.1} parent=0 // pred_region
    _
  $region21: #{simple_rnn_forward.1} parent=0 // pred_fallthru
    _
  %p22 = scmp.eq.s32.totalorder 0, 0
  // Predicated region
  $region22: #{simple_rnn_forward.1} parent=0 // pred_check
    %p23 = pneg %p22
  $region23: #{simple_rnn_forward.1} parent=0 // pred_check_branch
    %25 = sbr.rel (%p23) target = $region25
  $region24: #{simple_rnn_forward.1} parent=0 // pred_region
    %v26 = vld [vmem:[%s1] sm:$0xff]
    %27 = vst [vmem:[#allocation2] sm:$0xff] %v26
  $region25: #{simple_rnn_forward.1} parent=0 // pred_fallthru
    _
  %v28 = vld [vmem:[%s2] sm:$0xff]
  %v29 = vld [vmem:[%s2 + $0x8] sm:$0xff]
  %v30 = vld [vmem:[%s2 + $0x10] sm:$0xff]
  %v31 = vld [vmem:[%s2 + $0x18] sm:$0xff]
  %v32 = vld [vmem:[%s2 + $0x20] sm:$0xff]
  %v33 = vld [vmem:[%s2 + $0x28] sm:$0xff]
  %v34 = vld [vmem:[%s2 + $0x30] sm:$0xff]
  %v35 = vld [vmem:[%s2 + $0x38] sm:$0xff]
  %v36 = vld [vmem:[%s2 + $0x40] sm:$0xff]
  %v37 = vld [vmem:[%s2 + $0x48] sm:$0xff]
  %v38 = vld [vmem:[%s2 + $0x50] sm:$0xff]
  %v39 = vld [vmem:[%s2 + $0x58] sm:$0xff]
  %v40 = vld [vmem:[%s2 + $0x60] sm:$0xff]
  %v41 = vld [vmem:[%s2 + $0x68] sm:$0xff]
  %v42 = vld [vmem:[%s2 + $0x70] sm:$0xff]
  %v43 = vld [vmem:[%s2 + $0x78] sm:$0xff]
  %v44 = vld [vmem:[%s3] sm:$0xff]
  %v45 = vld [vmem:[%s3 + $0x8] sm:$0xff]
  %v46 = vld [vmem:[%s3 + $0x10] sm:$0xff]
  %v47 = vld [vmem:[%s3 + $0x18] sm:$0xff]
  %v48 = vld [vmem:[%s3 + $0x20] sm:$0xff]
  %v49 = vld [vmem:[%s3 + $0x28] sm:$0xff]
  %v50 = vld [vmem:[%s3 + $0x30] sm:$0xff]
  %v51 = vld [vmem:[%s3 + $0x38] sm:$0xff]
  %v52 = vld [vmem:[%s3 + $0x40] sm:$0xff]
  %v53 = vld [vmem:[%s3 + $0x48] sm:$0xff]
  %v54 = vld [vmem:[%s3 + $0x50] sm:$0xff]
  %v55 = vld [vmem:[%s3 + $0x58] sm:$0xff]
  %v56 = vld [vmem:[%s3 + $0x60] sm:$0xff]
  %v57 = vld [vmem:[%s3 + $0x68] sm:$0xff]
  %v58 = vld [vmem:[%s3 + $0x70] sm:$0xff]
  %v59 = vld [vmem:[%s3 + $0x78] sm:$0xff]
  %v60 = vld [vmem:[%s4] sm:$0x1]
  %v61 = vld [vmem:[#allocation2] sm:$0xff]
  %v62 = vld [vmem:[%s0] sm:$0xff]
  %63 = vmatprep.subr.mxu0 0.0
  %64 = vmatpush1.msra.mxu0 %v43
  %65 = vmatprep.subr.mxu0 0.0
  %66 = vmatpush1.msra.mxu0 %v42
  %67 = vmatprep.subr.mxu0 0.0
  %68 = vmatpush1.msra.mxu0 %v41
  %69 = vmatprep.subr.mxu0 0.0
  %70 = vmatpush1.msra.mxu0 %v40
  %71 = vmatprep.subr.mxu0 0.0
  %72 = vmatpush1.msra.mxu0 %v39
  %73 = vmatprep.subr.mxu0 0.0
  %74 = vmatpush1.msra.mxu0 %v38
  %75 = vmatprep.subr.mxu0 0.0
  %76 = vmatpush1.msra.mxu0 %v37
  %77 = vmatprep.subr.mxu0 0.0
  %78 = vmatpush1.msra.mxu0 %v36
  %79 = vmatprep.subr.mxu0 0.0
  %80 = vmatpush1.msra.mxu0 %v35
  %81 = vmatprep.subr.mxu0 0.0
  %82 = vmatpush1.msra.mxu0 %v34
  %83 = vmatprep.subr.mxu0 0.0
  %84 = vmatpush1.msra.mxu0 %v33
  %85 = vmatprep.subr.mxu0 0.0
  %86 = vmatpush1.msra.mxu0 %v32
  %87 = vmatprep.subr.mxu0 0.0
  %88 = vmatpush1.msra.mxu0 %v31
  %89 = vmatprep.subr.mxu0 0.0
  %90 = vmatpush1.msra.mxu0 %v30
  %91 = vmatprep.subr.mxu0 0.0
  %92 = vmatpush1.msra.mxu0 %v29
  %93 = vmatprep.subr.mxu0 0.0
  %94 = vmatpush1.msra.mxu0 %v28
  %95 = vmatprep.subr.mxu0 0.0
  %96 = vmatpush2.msra.mxu0 0.0
  %97 = vmatprep.subr.mxu0 0.0
  %98 = vmatpush2.msra.mxu0 0.0
  %99 = vmatprep.subr.mxu0 0.0
  %100 = vmatpush2.msra.mxu0 0.0
  %101 = vmatprep.subr.mxu0 0.0
  %102 = vmatpush2.msra.mxu0 0.0
  %103 = vmatprep.subr.mxu0 0.0
  %104 = vmatpush2.msra.mxu0 0.0
  %105 = vmatprep.subr.mxu0 0.0
  %106 = vmatpush2.msra.mxu0 0.0
  %107 = vmatprep.subr.mxu0 0.0
  %108 = vmatpush2.msra.mxu0 0.0
  %109 = vmatprep.subr.mxu0 0.0
  %110 = vmatpush2.msra.mxu0 0.0
  %111 = vmatprep.subr.mxu0 0.0
  %112 = vmatpush2.msra.mxu0 0.0
  %113 = vmatprep.subr.mxu0 0.0
  %114 = vmatpush2.msra.mxu0 0.0
  %115 = vmatprep.subr.mxu0 0.0
  %116 = vmatpush2.msra.mxu0 0.0
  %117 = vmatprep.subr.mxu0 0.0
  %118 = vmatpush2.msra.mxu0 0.0
  %119 = vmatprep.subr.mxu0 0.0
  %120 = vmatpush2.msra.mxu0 0.0
  %121 = vmatprep.subr.mxu0 0.0
  %122 = vmatpush2.msra.mxu0 0.0
  %123 = vmatprep.subr.mxu0 0.0
  %124 = vmatpush2.msra.mxu0 0.0
  %125 = vmatprep.subr.mxu0 0.0
  %126 = vmatpush2.msra.mxu0 0.0
  %127 = vmatprep.mubr.f32.mxu0 0.0
  %128 = vmatmul.mubr.f32.gmra.mxu0 %v61
  %v129 = vpop.f32.mrf.mxu0
  %v130 = vadd.f32 0.0, %v129
  %v131 = vpop.f32.mrf.mxu0
  %132 = vdwg.mxu0
  %v133 = vadd.f32 %v62, %v130
  %v134 = vtanh.pop %v133
  %135 = vst [vmem:[#allocation3] sm:$0xff] %v134
  %s136 = scalar_lea.vmem %s0, 8
  %v137 = vld [vmem:[%s136] sm:$0xff]
  %138 = vmatprep.subr.mxu0 0.0
  %139 = vmatpush1.msra.mxu0 %v43
  %140 = vmatprep.subr.mxu0 0.0
  %141 = vmatpush1.msra.mxu0 %v42
  %142 = vmatprep.subr.mxu0 0.0
  %143 = vmatpush1.msra.mxu0 %v41
  %144 = vmatprep.subr.mxu0 0.0
  %145 = vmatpush1.msra.mxu0 %v40
  %146 = vmatprep.subr.mxu0 0.0
  %147 = vmatpush1.msra.mxu0 %v39
  %148 = vmatprep.subr.mxu0 0.0
  %149 = vmatpush1.msra.mxu0 %v38
  %150 = vmatprep.subr.mxu0 0.0
  %151 = vmatpush1.msra.mxu0 %v37
  %152 = vmatprep.subr.mxu0 0.0
  %153 = vmatpush1.msra.mxu0 %v36
  %154 = vmatprep.subr.mxu0 0.0
  %155 = vmatpush1.msra.mxu0 %v35
  %156 = vmatprep.subr.mxu0 0.0
  %157 = vmatpush1.msra.mxu0 %v34
  %158 = vmatprep.subr.mxu0 0.0
  %159 = vmatpush1.msra.mxu0 %v33
  %160 = vmatprep.subr.mxu0 0.0
  %161 = vmatpush1.msra.mxu0 %v32
  %162 = vmatprep.subr.mxu0 0.0
  %163 = vmatpush1.msra.mxu0 %v31
  %164 = vmatprep.subr.mxu0 0.0
  %165 = vmatpush1.msra.mxu0 %v30
  %166 = vmatprep.subr.mxu0 0.0
  %167 = vmatpush1.msra.mxu0 %v29
  %168 = vmatprep.subr.mxu0 0.0
  %169 = vmatpush1.msra.mxu0 %v28
  %170 = vmatprep.subr.mxu0 0.0
  %171 = vmatpush2.msra.mxu0 0.0
  %172 = vmatprep.subr.mxu0 0.0
  %173 = vmatpush2.msra.mxu0 0.0
  %174 = vmatprep.subr.mxu0 0.0
  %175 = vmatpush2.msra.mxu0 0.0
  %176 = vmatprep.subr.mxu0 0.0
  %177 = vmatpush2.msra.mxu0 0.0
  %178 = vmatprep.subr.mxu0 0.0
  %179 = vmatpush2.msra.mxu0 0.0
  %180 = vmatprep.subr.mxu0 0.0
  %181 = vmatpush2.msra.mxu0 0.0
  %182 = vmatprep.subr.mxu0 0.0
  %183 = vmatpush2.msra.mxu0 0.0
  %184 = vmatprep.subr.mxu0 0.0
  %185 = vmatpush2.msra.mxu0 0.0
  %186 = vmatprep.subr.mxu0 0.0
  %187 = vmatpush2.msra.mxu0 0.0
  %188 = vmatprep.subr.mxu0 0.0
  %189 = vmatpush2.msra.mxu0 0.0
  %190 = vmatprep.subr.mxu0 0.0
  %191 = vmatpush2.msra.mxu0 0.0
  %192 = vmatprep.subr.mxu0 0.0
  %193 = vmatpush2.msra.mxu0 0.0
  %194 = vmatprep.subr.mxu0 0.0
  %195 = vmatpush2.msra.mxu0 0.0
  %196 = vmatprep.subr.mxu0 0.0
  %197 = vmatpush2.msra.mxu0 0.0
  %198 = vmatprep.subr.mxu0 0.0
  %199 = vmatpush2.msra.mxu0 0.0
  %200 = vmatprep.subr.mxu0 0.0
  %201 = vmatpush2.msra.mxu0 0.0
  %202 = vmatprep.mubr.f32.mxu0 0.0
  %203 = vmatmul.mubr.f32.gmra.mxu0 %v134
  %v204 = vpop.f32.mrf.mxu0
  %v205 = vadd.f32 0.0, %v204
  %v206 = vpop.f32.mrf.mxu0
  %207 = vdwg.mxu0
  %v208 = vadd.f32 %v137, %v205
  %v209 = vtanh.pop %v208
  %s210 = scalar_lea.vmem [#allocation3], 8
  %211 = vst [vmem:[%s210] sm:$0xff] %v209
  %s212 = scalar_lea.vmem %s0, 16
  %v213 = vld [vmem:[%s212] sm:$0xff]
  %214 = vmatprep.subr.mxu0 0.0
  %215 = vmatpush1.msra.mxu0 %v43
  %216 = vmatprep.subr.mxu0 0.0
  %217 = vmatpush1.msra.mxu0 %v42
  %218 = vmatprep.subr.mxu0 0.0
  %219 = vmatpush1.msra.mxu0 %v41
  %220 = vmatprep.subr.mxu0 0.0
  %221 = vmatpush1.msra.mxu0 %v40
  %222 = vmatprep.subr.mxu0 0.0
  %223 = vmatpush1.msra.mxu0 %v39
  %224 = vmatprep.subr.mxu0 0.0
  %225 = vmatpush1.msra.mxu0 %v38
  %226 = vmatprep.subr.mxu0 0.0
  %227 = vmatpush1.msra.mxu0 %v37
  %228 = vmatprep.subr.mxu0 0.0
  %229 = vmatpush1.msra.mxu0 %v36
  %230 = vmatprep.subr.mxu0 0.0
  %231 = vmatpush1.msra.mxu0 %v35
  %232 = vmatprep.subr.mxu0 0.0
  %233 = vmatpush1.msra.mxu0 %v34
  %234 = vmatprep.subr.mxu0 0.0
  %235 = vmatpush1.msra.mxu0 %v33
  %236 = vmatprep.subr.mxu0 0.0
  %237 = vmatpush1.msra.mxu0 %v32
  %238 = vmatprep.subr.mxu0 0.0
  %239 = vmatpush1.msra.mxu0 %v31
  %240 = vmatprep.subr.mxu0 0.0
  %241 = vmatpush1.msra.mxu0 %v30
  %242 = vmatprep.subr.mxu0 0.0
  %243 = vmatpush1.msra.mxu0 %v29
  %244 = vmatprep.subr.mxu0 0.0
  %245 = vmatpush1.msra.mxu0 %v28
  %246 = vmatprep.subr.mxu0 0.0
  %247 = vmatpush2.msra.mxu0 0.0
  %248 = vmatprep.subr.mxu0 0.0
  %249 = vmatpush2.msra.mxu0 0.0
  %250 = vmatprep.subr.mxu0 0.0
  %251 = vmatpush2.msra.mxu0 0.0
  %252 = vmatprep.subr.mxu0 0.0
  %253 = vmatpush2.msra.mxu0 0.0
  %254 = vmatprep.subr.mxu0 0.0
  %255 = vmatpush2.msra.mxu0 0.0
  %256 = vmatprep.subr.mxu0 0.0
  %257 = vmatpush2.msra.mxu0 0.0
  %258 = vmatprep.subr.mxu0 0.0
  %259 = vmatpush2.msra.mxu0 0.0
  %260 = vmatprep.subr.mxu0 0.0
  %261 = vmatpush2.msra.mxu0 0.0
  %262 = vmatprep.subr.mxu0 0.0
  %263 = vmatpush2.msra.mxu0 0.0
  %264 = vmatprep.subr.mxu0 0.0
  %265 = vmatpush2.msra.mxu0 0.0
  %266 = vmatprep.subr.mxu0 0.0
  %267 = vmatpush2.msra.mxu0 0.0
  %268 = vmatprep.subr.mxu0 0.0
  %269 = vmatpush2.msra.mxu0 0.0
  %270 = vmatprep.subr.mxu0 0.0
  %271 = vmatpush2.msra.mxu0 0.0
  %272 = vmatprep.subr.mxu0 0.0
  %273 = vmatpush2.msra.mxu0 0.0
  %274 = vmatprep.subr.mxu0 0.0
  %275 = vmatpush2.msra.mxu0 0.0
  %276 = vmatprep.subr.mxu0 0.0
  %277 = vmatpush2.msra.mxu0 0.0
  %278 = vmatprep.mubr.f32.mxu0 0.0
  %279 = vmatmul.mubr.f32.gmra.mxu0 %v209
  %v280 = vpop.f32.mrf.mxu0
  %v281 = vadd.f32 0.0, %v280
  %v282 = vpop.f32.mrf.mxu0
  %283 = vdwg.mxu0
  %v284 = vadd.f32 %v213, %v281
  %v285 = vtanh.pop %v284
  %s286 = scalar_lea.vmem [#allocation3], 16
  %287 = vst [vmem:[%s286] sm:$0xff] %v285
  %s288 = scalar_lea.vmem %s0, 24
  %v289 = vld [vmem:[%s288] sm:$0xff]
  %290 = vmatprep.subr.mxu0 0.0
  %291 = vmatpush1.msra.mxu0 %v43
  %292 = vmatprep.subr.mxu0 0.0
  %293 = vmatpush1.msra.mxu0 %v42
  %294 = vmatprep.subr.mxu0 0.0
  %295 = vmatpush1.msra.mxu0 %v41
  %296 = vmatprep.subr.mxu0 0.0
  %297 = vmatpush1.msra.mxu0 %v40
  %298 = vmatprep.subr.mxu0 0.0
  %299 = vmatpush1.msra.mxu0 %v39
  %300 = vmatprep.subr.mxu0 0.0
  %301 = vmatpush1.msra.mxu0 %v38
  %302 = vmatprep.subr.mxu0 0.0
  %303 = vmatpush1.msra.mxu0 %v37
  %304 = vmatprep.subr.mxu0 0.0
  %305 = vmatpush1.msra.mxu0 %v36
  %306 = vmatprep.subr.mxu0 0.0
  %307 = vmatpush1.msra.mxu0 %v35
  %308 = vmatprep.subr.mxu0 0.0
  %309 = vmatpush1.msra.mxu0 %v34
  %310 = vmatprep.subr.mxu0 0.0
  %311 = vmatpush1.msra.mxu0 %v33
  %312 = vmatprep.subr.mxu0 0.0
  %313 = vmatpush1.msra.mxu0 %v32
  %314 = vmatprep.subr.mxu0 0.0
  %315 = vmatpush1.msra.mxu0 %v31
  %316 = vmatprep.subr.mxu0 0.0
  %317 = vmatpush1.msra.mxu0 %v30
  %318 = vmatprep.subr.mxu0 0.0
  %319 = vmatpush1.msra.mxu0 %v29
  %320 = vmatprep.subr.mxu0 0.0
  %321 = vmatpush1.msra.mxu0 %v28
  %322 = vmatprep.subr.mxu0 0.0
  %323 = vmatpush2.msra.mxu0 0.0
  %324 = vmatprep.subr.mxu0 0.0
  %325 = vmatpush2.msra.mxu0 0.0
  %326 = vmatprep.subr.mxu0 0.0
  %327 = vmatpush2.msra.mxu0 0.0
  %328 = vmatprep.subr.mxu0 0.0
  %329 = vmatpush2.msra.mxu0 0.0
  %330 = vmatprep.subr.mxu0 0.0
  %331 = vmatpush2.msra.mxu0 0.0
  %332 = vmatprep.subr.mxu0 0.0
  %333 = vmatpush2.msra.mxu0 0.0
  %334 = vmatprep.subr.mxu0 0.0
  %335 = vmatpush2.msra.mxu0 0.0
  %336 = vmatprep.subr.mxu0 0.0
  %337 = vmatpush2.msra.mxu0 0.0
  %338 = vmatprep.subr.mxu0 0.0
  %339 = vmatpush2.msra.mxu0 0.0
  %340 = vmatprep.subr.mxu0 0.0
  %341 = vmatpush2.msra.mxu0 0.0
  %342 = vmatprep.subr.mxu0 0.0
  %343 = vmatpush2.msra.mxu0 0.0
  %344 = vmatprep.subr.mxu0 0.0
  %345 = vmatpush2.msra.mxu0 0.0
  %346 = vmatprep.subr.mxu0 0.0
  %347 = vmatpush2.msra.mxu0 0.0
  %348 = vmatprep.subr.mxu0 0.0
  %349 = vmatpush2.msra.mxu0 0.0
  %350 = vmatprep.subr.mxu0 0.0
  %351 = vmatpush2.msra.mxu0 0.0
  %352 = vmatprep.subr.mxu0 0.0
  %353 = vmatpush2.msra.mxu0 0.0
  %354 = vmatprep.mubr.f32.mxu0 0.0
  %355 = vmatmul.mubr.f32.gmra.mxu0 %v285
  %v356 = vpop.f32.mrf.mxu0
  %v357 = vadd.f32 0.0, %v356
  %v358 = vpop.f32.mrf.mxu0
  %359 = vdwg.mxu0
  %v360 = vadd.f32 %v289, %v357
  %v361 = vtanh.pop %v360
  %s362 = scalar_lea.vmem [#allocation3], 24
  %363 = vst [vmem:[%s362] sm:$0xff] %v361
  %s364 = scalar_lea.vmem %s0, 32
  %v365 = vld [vmem:[%s364] sm:$0xff]
  %366 = vmatprep.subr.mxu0 0.0
  %367 = vmatpush1.msra.mxu0 %v43
  %368 = vmatprep.subr.mxu0 0.0
  %369 = vmatpush1.msra.mxu0 %v42
  %370 = vmatprep.subr.mxu0 0.0
  %371 = vmatpush1.msra.mxu0 %v41
  %372 = vmatprep.subr.mxu0 0.0
  %373 = vmatpush1.msra.mxu0 %v40
  %374 = vmatprep.subr.mxu0 0.0
  %375 = vmatpush1.msra.mxu0 %v39
  %376 = vmatprep.subr.mxu0 0.0
  %377 = vmatpush1.msra.mxu0 %v38
  %378 = vmatprep.subr.mxu0 0.0
  %379 = vmatpush1.msra.mxu0 %v37
  %380 = vmatprep.subr.mxu0 0.0
  %381 = vmatpush1.msra.mxu0 %v36
  %382 = vmatprep.subr.mxu0 0.0
  %383 = vmatpush1.msra.mxu0 %v35
  %384 = vmatprep.subr.mxu0 0.0
  %385 = vmatpush1.msra.mxu0 %v34
  %386 = vmatprep.subr.mxu0 0.0
  %387 = vmatpush1.msra.mxu0 %v33
  %388 = vmatprep.subr.mxu0 0.0
  %389 = vmatpush1.msra.mxu0 %v32
  %390 = vmatprep.subr.mxu0 0.0
  %391 = vmatpush1.msra.mxu0 %v31
  %392 = vmatprep.subr.mxu0 0.0
  %393 = vmatpush1.msra.mxu0 %v30
  %394 = vmatprep.subr.mxu0 0.0
  %395 = vmatpush1.msra.mxu0 %v29
  %396 = vmatprep.subr.mxu0 0.0
  %397 = vmatpush1.msra.mxu0 %v28
  %398 = vmatprep.subr.mxu0 0.0
  %399 = vmatpush2.msra.mxu0 0.0
  %400 = vmatprep.subr.mxu0 0.0
  %401 = vmatpush2.msra.mxu0 0.0
  %402 = vmatprep.subr.mxu0 0.0
  %403 = vmatpush2.msra.mxu0 0.0
  %404 = vmatprep.subr.mxu0 0.0
  %405 = vmatpush2.msra.mxu0 0.0
  %406 = vmatprep.subr.mxu0 0.0
  %407 = vmatpush2.msra.mxu0 0.0
  %408 = vmatprep.subr.mxu0 0.0
  %409 = vmatpush2.msra.mxu0 0.0
  %410 = vmatprep.subr.mxu0 0.0
  %411 = vmatpush2.msra.mxu0 0.0
  %412 = vmatprep.subr.mxu0 0.0
  %413 = vmatpush2.msra.mxu0 0.0
  %414 = vmatprep.subr.mxu0 0.0
  %415 = vmatpush2.msra.mxu0 0.0
  %416 = vmatprep.subr.mxu0 0.0
  %417 = vmatpush2.msra.mxu0 0.0
  %418 = vmatprep.subr.mxu0 0.0
  %419 = vmatpush2.msra.mxu0 0.0
  %420 = vmatprep.subr.mxu0 0.0
  %421 = vmatpush2.msra.mxu0 0.0
  %422 = vmatprep.subr.mxu0 0.0
  %423 = vmatpush2.msra.mxu0 0.0
  %424 = vmatprep.subr.mxu0 0.0
  %425 = vmatpush2.msra.mxu0 0.0
  %426 = vmatprep.subr.mxu0 0.0
  %427 = vmatpush2.msra.mxu0 0.0
  %428 = vmatprep.subr.mxu0 0.0
  %429 = vmatpush2.msra.mxu0 0.0
  %430 = vmatprep.mubr.f32.mxu0 0.0
  %431 = vmatmul.mubr.f32.gmra.mxu0 %v361
  %v432 = vpop.f32.mrf.mxu0
  %v433 = vadd.f32 0.0, %v432
  %v434 = vpop.f32.mrf.mxu0
  %435 = vdwg.mxu0
  %v436 = vadd.f32 %v365, %v433
  %v437 = vtanh.pop %v436
  %s438 = scalar_lea.vmem [#allocation3], 32
  %439 = vst [vmem:[%s438] sm:$0xff] %v437
  %s440 = scalar_lea.vmem %s0, 40
  %v441 = vld [vmem:[%s440] sm:$0xff]
  %442 = vmatprep.subr.mxu0 0.0
  %443 = vmatpush1.msra.mxu0 %v43
  %444 = vmatprep.subr.mxu0 0.0
  %445 = vmatpush1.msra.mxu0 %v42
  %446 = vmatprep.subr.mxu0 0.0
  %447 = vmatpush1.msra.mxu0 %v41
  %448 = vmatprep.subr.mxu0 0.0
  %449 = vmatpush1.msra.mxu0 %v40
  %450 = vmatprep.subr.mxu0 0.0
  %451 = vmatpush1.msra.mxu0 %v39
  %452 = vmatprep.subr.mxu0 0.0
  %453 = vmatpush1.msra.mxu0 %v38
  %454 = vmatprep.subr.mxu0 0.0
  %455 = vmatpush1.msra.mxu0 %v37
  %456 = vmatprep.subr.mxu0 0.0
  %457 = vmatpush1.msra.mxu0 %v36
  %458 = vmatprep.subr.mxu0 0.0
  %459 = vmatpush1.msra.mxu0 %v35
  %460 = vmatprep.subr.mxu0 0.0
  %461 = vmatpush1.msra.mxu0 %v34
  %462 = vmatprep.subr.mxu0 0.0
  %463 = vmatpush1.msra.mxu0 %v33
  %464 = vmatprep.subr.mxu0 0.0
  %465 = vmatpush1.msra.mxu0 %v32
  %466 = vmatprep.subr.mxu0 0.0
  %467 = vmatpush1.msra.mxu0 %v31
  %468 = vmatprep.subr.mxu0 0.0
  %469 = vmatpush1.msra.mxu0 %v30
  %470 = vmatprep.subr.mxu0 0.0
  %471 = vmatpush1.msra.mxu0 %v29
  %472 = vmatprep.subr.mxu0 0.0
  %473 = vmatpush1.msra.mxu0 %v28
  %474 = vmatprep.subr.mxu0 0.0
  %475 = vmatpush2.msra.mxu0 0.0
  %476 = vmatprep.subr.mxu0 0.0
  %477 = vmatpush2.msra.mxu0 0.0
  %478 = vmatprep.subr.mxu0 0.0
  %479 = vmatpush2.msra.mxu0 0.0
  %480 = vmatprep.subr.mxu0 0.0
  %481 = vmatpush2.msra.mxu0 0.0
  %482 = vmatprep.subr.mxu0 0.0
  %483 = vmatpush2.msra.mxu0 0.0
  %484 = vmatprep.subr.mxu0 0.0
  %485 = vmatpush2.msra.mxu0 0.0
  %486 = vmatprep.subr.mxu0 0.0
  %487 = vmatpush2.msra.mxu0 0.0
  %488 = vmatprep.subr.mxu0 0.0
  %489 = vmatpush2.msra.mxu0 0.0
  %490 = vmatprep.subr.mxu0 0.0
  %491 = vmatpush2.msra.mxu0 0.0
  %492 = vmatprep.subr.mxu0 0.0
  %493 = vmatpush2.msra.mxu0 0.0
  %494 = vmatprep.subr.mxu0 0.0
  %495 = vmatpush2.msra.mxu0 0.0
  %496 = vmatprep.subr.mxu0 0.0
  %497 = vmatpush2.msra.mxu0 0.0
  %498 = vmatprep.subr.mxu0 0.0
  %499 = vmatpush2.msra.mxu0 0.0
  %500 = vmatprep.subr.mxu0 0.0
  %501 = vmatpush2.msra.mxu0 0.0
  %502 = vmatprep.subr.mxu0 0.0
  %503 = vmatpush2.msra.mxu0 0.0
  %504 = vmatprep.subr.mxu0 0.0
  %505 = vmatpush2.msra.mxu0 0.0
  %506 = vmatprep.mubr.f32.mxu0 0.0
  %507 = vmatmul.mubr.f32.gmra.mxu0 %v437
  %v508 = vpop.f32.mrf.mxu0
  %v509 = vadd.f32 0.0, %v508
  %v510 = vpop.f32.mrf.mxu0
  %511 = vdwg.mxu0
  %v512 = vadd.f32 %v441, %v509
  %v513 = vtanh.pop %v512
  %s514 = scalar_lea.vmem [#allocation3], 40
  %515 = vst [vmem:[%s514] sm:$0xff] %v513
  %s516 = scalar_lea.vmem %s0, 48
  %v517 = vld [vmem:[%s516] sm:$0xff]
  %518 = vmatprep.subr.mxu0 0.0
  %519 = vmatpush1.msra.mxu0 %v43
  %520 = vmatprep.subr.mxu0 0.0
  %521 = vmatpush1.msra.mxu0 %v42
  %522 = vmatprep.subr.mxu0 0.0
  %523 = vmatpush1.msra.mxu0 %v41
  %524 = vmatprep.subr.mxu0 0.0
  %525 = vmatpush1.msra.mxu0 %v40
  %526 = vmatprep.subr.mxu0 0.0
  %527 = vmatpush1.msra.mxu0 %v39
  %528 = vmatprep.subr.mxu0 0.0
  %529 = vmatpush1.msra.mxu0 %v38
  %530 = vmatprep.subr.mxu0 0.0
  %531 = vmatpush1.msra.mxu0 %v37
  %532 = vmatprep.subr.mxu0 0.0
  %533 = vmatpush1.msra.mxu0 %v36
  %534 = vmatprep.subr.mxu0 0.0
  %535 = vmatpush1.msra.mxu0 %v35
  %536 = vmatprep.subr.mxu0 0.0
  %537 = vmatpush1.msra.mxu0 %v34
  %538 = vmatprep.subr.mxu0 0.0
  %539 = vmatpush1.msra.mxu0 %v33
  %540 = vmatprep.subr.mxu0 0.0
  %541 = vmatpush1.msra.mxu0 %v32
  %542 = vmatprep.subr.mxu0 0.0
  %543 = vmatpush1.msra.mxu0 %v31
  %544 = vmatprep.subr.mxu0 0.0
  %545 = vmatpush1.msra.mxu0 %v30
  %546 = vmatprep.subr.mxu0 0.0
  %547 = vmatpush1.msra.mxu0 %v29
  %548 = vmatprep.subr.mxu0 0.0
  %549 = vmatpush1.msra.mxu0 %v28
  %550 = vmatprep.subr.mxu0 0.0
  %551 = vmatpush2.msra.mxu0 0.0
  %552 = vmatprep.subr.mxu0 0.0
  %553 = vmatpush2.msra.mxu0 0.0
  %554 = vmatprep.subr.mxu0 0.0
  %555 = vmatpush2.msra.mxu0 0.0
  %556 = vmatprep.subr.mxu0 0.0
  %557 = vmatpush2.msra.mxu0 0.0
  %558 = vmatprep.subr.mxu0 0.0
  %559 = vmatpush2.msra.mxu0 0.0
  %560 = vmatprep.subr.mxu0 0.0
  %561 = vmatpush2.msra.mxu0 0.0
  %562 = vmatprep.subr.mxu0 0.0
  %563 = vmatpush2.msra.mxu0 0.0
  %564 = vmatprep.subr.mxu0 0.0
  %565 = vmatpush2.msra.mxu0 0.0
  %566 = vmatprep.subr.mxu0 0.0
  %567 = vmatpush2.msra.mxu0 0.0
  %568 = vmatprep.subr.mxu0 0.0
  %569 = vmatpush2.msra.mxu0 0.0
  %570 = vmatprep.subr.mxu0 0.0
  %571 = vmatpush2.msra.mxu0 0.0
  %572 = vmatprep.subr.mxu0 0.0
  %573 = vmatpush2.msra.mxu0 0.0
  %574 = vmatprep.subr.mxu0 0.0
  %575 = vmatpush2.msra.mxu0 0.0
  %576 = vmatprep.subr.mxu0 0.0
  %577 = vmatpush2.msra.mxu0 0.0
  %578 = vmatprep.subr.mxu0 0.0
  %579 = vmatpush2.msra.mxu0 0.0
  %580 = vmatprep.subr.mxu0 0.0
  %581 = vmatpush2.msra.mxu0 0.0
  %582 = vmatprep.mubr.f32.mxu0 0.0
  %583 = vmatmul.mubr.f32.gmra.mxu0 %v513
  %v584 = vpop.f32.mrf.mxu0
  %v585 = vadd.f32 0.0, %v584
  %v586 = vpop.f32.mrf.mxu0
  %587 = vdwg.mxu0
  %v588 = vadd.f32 %v517, %v585
  %v589 = vtanh.pop %v588
  %s590 = scalar_lea.vmem [#allocation3], 48
  %591 = vst [vmem:[%s590] sm:$0xff] %v589
  %s592 = scalar_lea.vmem %s0, 56
  %v593 = vld [vmem:[%s592] sm:$0xff]
  %594 = vmatprep.subr.mxu0 0.0
  %595 = vmatpush1.msra.mxu0 %v43
  %596 = vmatprep.subr.mxu0 0.0
  %597 = vmatpush1.msra.mxu0 %v42
  %598 = vmatprep.subr.mxu0 0.0
  %599 = vmatpush1.msra.mxu0 %v41
  %600 = vmatprep.subr.mxu0 0.0
  %601 = vmatpush1.msra.mxu0 %v40
  %602 = vmatprep.subr.mxu0 0.0
  %603 = vmatpush1.msra.mxu0 %v39
  %604 = vmatprep.subr.mxu0 0.0
  %605 = vmatpush1.msra.mxu0 %v38
  %606 = vmatprep.subr.mxu0 0.0
  %607 = vmatpush1.msra.mxu0 %v37
  %608 = vmatprep.subr.mxu0 0.0
  %609 = vmatpush1.msra.mxu0 %v36
  %610 = vmatprep.subr.mxu0 0.0
  %611 = vmatpush1.msra.mxu0 %v35
  %612 = vmatprep.subr.mxu0 0.0
  %613 = vmatpush1.msra.mxu0 %v34
  %614 = vmatprep.subr.mxu0 0.0
  %615 = vmatpush1.msra.mxu0 %v33
  %616 = vmatprep.subr.mxu0 0.0
  %617 = vmatpush1.msra.mxu0 %v32
  %618 = vmatprep.subr.mxu0 0.0
  %619 = vmatpush1.msra.mxu0 %v31
  %620 = vmatprep.subr.mxu0 0.0
  %621 = vmatpush1.msra.mxu0 %v30
  %622 = vmatprep.subr.mxu0 0.0
  %623 = vmatpush1.msra.mxu0 %v29
  %624 = vmatprep.subr.mxu0 0.0
  %625 = vmatpush1.msra.mxu0 %v28
  %626 = vmatprep.subr.mxu0 0.0
  %627 = vmatpush2.msra.mxu0 0.0
  %628 = vmatprep.subr.mxu0 0.0
  %629 = vmatpush2.msra.mxu0 0.0
  %630 = vmatprep.subr.mxu0 0.0
  %631 = vmatpush2.msra.mxu0 0.0
  %632 = vmatprep.subr.mxu0 0.0
  %633 = vmatpush2.msra.mxu0 0.0
  %634 = vmatprep.subr.mxu0 0.0
  %635 = vmatpush2.msra.mxu0 0.0
  %636 = vmatprep.subr.mxu0 0.0
  %637 = vmatpush2.msra.mxu0 0.0
  %638 = vmatprep.subr.mxu0 0.0
  %639 = vmatpush2.msra.mxu0 0.0
  %640 = vmatprep.subr.mxu0 0.0
  %641 = vmatpush2.msra.mxu0 0.0
  %642 = vmatprep.subr.mxu0 0.0
  %643 = vmatpush2.msra.mxu0 0.0
  %644 = vmatprep.subr.mxu0 0.0
  %645 = vmatpush2.msra.mxu0 0.0
  %646 = vmatprep.subr.mxu0 0.0
  %647 = vmatpush2.msra.mxu0 0.0
  %648 = vmatprep.subr.mxu0 0.0
  %649 = vmatpush2.msra.mxu0 0.0
  %650 = vmatprep.subr.mxu0 0.0
  %651 = vmatpush2.msra.mxu0 0.0
  %652 = vmatprep.subr.mxu0 0.0
  %653 = vmatpush2.msra.mxu0 0.0
  %654 = vmatprep.subr.mxu0 0.0
  %655 = vmatpush2.msra.mxu0 0.0
  %656 = vmatprep.subr.mxu0 0.0
  %657 = vmatpush2.msra.mxu0 0.0
  %658 = vmatprep.mubr.f32.mxu0 0.0
  %659 = vmatmul.mubr.f32.gmra.mxu0 %v589
  %v660 = vpop.f32.mrf.mxu0
  %v661 = vadd.f32 0.0, %v660
  %v662 = vpop.f32.mrf.mxu0
  %663 = vdwg.mxu0
  %v664 = vadd.f32 %v593, %v661
  %v665 = vtanh.pop %v664
  %s666 = scalar_lea.vmem [#allocation3], 56
  %667 = vst [vmem:[%s666] sm:$0xff] %v665
  %v668 = vld [vmem:[#allocation3] sm:$0xff]
  %v669 = vld [vmem:[#allocation3 + $0x8] sm:$0xff]
  %v670 = vld [vmem:[#allocation3 + $0x10] sm:$0xff]
  %v671 = vld [vmem:[#allocation3 + $0x18] sm:$0xff]
  %v672 = vld [vmem:[#allocation3 + $0x20] sm:$0xff]
  %v673 = vld [vmem:[#allocation3 + $0x28] sm:$0xff]
  %v674 = vld [vmem:[#allocation3 + $0x30] sm:$0xff]
  %v675 = vld [vmem:[#allocation3 + $0x38] sm:$0xff]
  %v677 = vlaneseq
  %v678 = vshrl.u32 %v677, 7
  %v679 = vsub.s32 0, %v678
  %v680 = vrot.slane %v60, %v679
  %682 = vmatprep.subr.mxu0 0.0
  %683 = vmatpush1.msra.mxu0 %v59
  %684 = vmatprep.subr.mxu0 0.0
  %685 = vmatpush1.msra.mxu0 %v58
  %686 = vmatprep.subr.mxu0 0.0
  %687 = vmatpush1.msra.mxu0 %v57
  %688 = vmatprep.subr.mxu0 0.0
  %689 = vmatpush1.msra.mxu0 %v56
  %690 = vmatprep.subr.mxu0 0.0
  %691 = vmatpush1.msra.mxu0 %v55
  %692 = vmatprep.subr.mxu0 0.0
  %693 = vmatpush1.msra.mxu0 %v54
  %694 = vmatprep.subr.mxu0 0.0
  %695 = vmatpush1.msra.mxu0 %v53
  %696 = vmatprep.subr.mxu0 0.0
  %697 = vmatpush1.msra.mxu0 %v52
  %698 = vmatprep.subr.mxu0 0.0
  %699 = vmatpush1.msra.mxu0 %v51
  %700 = vmatprep.subr.mxu0 0.0
  %701 = vmatpush1.msra.mxu0 %v50
  %702 = vmatprep.subr.mxu0 0.0
  %703 = vmatpush1.msra.mxu0 %v49
  %704 = vmatprep.subr.mxu0 0.0
  %705 = vmatpush1.msra.mxu0 %v48
  %706 = vmatprep.subr.mxu0 0.0
  %707 = vmatpush1.msra.mxu0 %v47
  %708 = vmatprep.subr.mxu0 0.0
  %709 = vmatpush1.msra.mxu0 %v46
  %710 = vmatprep.subr.mxu0 0.0
  %711 = vmatpush1.msra.mxu0 %v45
  %712 = vmatprep.subr.mxu0 0.0
  %713 = vmatpush1.msra.mxu0 %v44
  %714 = vmatprep.subr.mxu0 0.0
  %715 = vmatpush2.msra.mxu0 0.0
  %716 = vmatprep.subr.mxu0 0.0
  %717 = vmatpush2.msra.mxu0 0.0
  %718 = vmatprep.subr.mxu0 0.0
  %719 = vmatpush2.msra.mxu0 0.0
  %720 = vmatprep.subr.mxu0 0.0
  %721 = vmatpush2.msra.mxu0 0.0
  %722 = vmatprep.subr.mxu0 0.0
  %723 = vmatpush2.msra.mxu0 0.0
  %724 = vmatprep.subr.mxu0 0.0
  %725 = vmatpush2.msra.mxu0 0.0
  %726 = vmatprep.subr.mxu0 0.0
  %727 = vmatpush2.msra.mxu0 0.0
  %728 = vmatprep.subr.mxu0 0.0
  %729 = vmatpush2.msra.mxu0 0.0
  %730 = vmatprep.subr.mxu0 0.0
  %731 = vmatpush2.msra.mxu0 0.0
  %732 = vmatprep.subr.mxu0 0.0
  %733 = vmatpush2.msra.mxu0 0.0
  %734 = vmatprep.subr.mxu0 0.0
  %735 = vmatpush2.msra.mxu0 0.0
  %736 = vmatprep.subr.mxu0 0.0
  %737 = vmatpush2.msra.mxu0 0.0
  %738 = vmatprep.subr.mxu0 0.0
  %739 = vmatpush2.msra.mxu0 0.0
  %740 = vmatprep.subr.mxu0 0.0
  %741 = vmatpush2.msra.mxu0 0.0
  %742 = vmatprep.subr.mxu0 0.0
  %743 = vmatpush2.msra.mxu0 0.0
  %744 = vmatprep.subr.mxu0 0.0
  %745 = vmatpush2.msra.mxu0 0.0
  %746 = vmatprep.mubr.f32.mxu0 0.0
  %747 = vmatmul.mubr.f32.gmra.mxu0 %v668
  %v748 = vpop.f32.mrf.mxu0
  %v749 = vadd.f32 %v680, %v748
  %v750 = vpop.f32.mrf.mxu0
  %751 = vmatprep.mubr.f32.mxu0 0.0
  %752 = vmatmul.mubr.f32.gmra.mxu0 %v669
  %v753 = vpop.f32.mrf.mxu0
  %v754 = vadd.f32 %v680, %v753
  %v755 = vpop.f32.mrf.mxu0
  %756 = vmatprep.mubr.f32.mxu0 0.0
  %757 = vmatmul.mubr.f32.gmra.mxu0 %v670
  %v758 = vpop.f32.mrf.mxu0
  %v759 = vadd.f32 %v680, %v758
  %v760 = vpop.f32.mrf.mxu0
  %761 = vmatprep.mubr.f32.mxu0 0.0
  %762 = vmatmul.mubr.f32.gmra.mxu0 %v671
  %v763 = vpop.f32.mrf.mxu0
  %v764 = vadd.f32 %v680, %v763
  %v765 = vpop.f32.mrf.mxu0
  %766 = vmatprep.mubr.f32.mxu0 0.0
  %767 = vmatmul.mubr.f32.gmra.mxu0 %v672
  %v768 = vpop.f32.mrf.mxu0
  %v769 = vadd.f32 %v680, %v768
  %v770 = vpop.f32.mrf.mxu0
  %771 = vmatprep.mubr.f32.mxu0 0.0
  %772 = vmatmul.mubr.f32.gmra.mxu0 %v673
  %v773 = vpop.f32.mrf.mxu0
  %v774 = vadd.f32 %v680, %v773
  %v775 = vpop.f32.mrf.mxu0
  %776 = vmatprep.mubr.f32.mxu0 0.0
  %777 = vmatmul.mubr.f32.gmra.mxu0 %v674
  %v778 = vpop.f32.mrf.mxu0
  %v779 = vadd.f32 %v680, %v778
  %v780 = vpop.f32.mrf.mxu0
  %781 = vmatprep.mubr.f32.mxu0 0.0
  %782 = vmatmul.mubr.f32.gmra.mxu0 %v675
  %v783 = vpop.f32.mrf.mxu0
  %v784 = vadd.f32 %v680, %v783
  %v785 = vpop.f32.mrf.mxu0
  %786 = vdwg.mxu0
  %787 = vst [vmem:[%s5] sm:$0xff] %v749
  %788 = vst [vmem:[%s5 + $0x8] sm:$0xff] %v754
  %789 = vst [vmem:[%s5 + $0x10] sm:$0xff] %v759
  %790 = vst [vmem:[%s5 + $0x18] sm:$0xff] %v764
  %791 = vst [vmem:[%s5 + $0x20] sm:$0xff] %v769
  %792 = vst [vmem:[%s5 + $0x28] sm:$0xff] %v774
  %793 = vst [vmem:[%s5 + $0x30] sm:$0xff] %v779
  %794 = vst [vmem:[%s5 + $0x38] sm:$0xff] %v784
  %795 = vst [vmem:[#allocation2] sm:$0xff] %v665
  // Predicated region
  $region26: #{simple_rnn_forward.1} parent=0 // pred_check
    %p796 = pneg %p22
  $region27: #{simple_rnn_forward.1} parent=0 // pred_check_branch
    %798 = sbr.rel (%p796) target = $region29
  $region28: #{simple_rnn_forward.1} parent=0 // pred_region
    %v799 = vld [vmem:[#allocation3 + $0x38] sm:$0xff]
    %800 = vst [vmem:[%s6] sm:$0xff] %v799
  $region29: #{simple_rnn_forward.1} parent=0 // pred_fallthru
    _
  // Predicated region
  $region30: #{simple_rnn_forward.1} parent=0 // pred_check
    _
  $region31: #{simple_rnn_forward.1} parent=0 // pred_check_branch
    %802 = sbr.rel (0) target = $region33
  $region32: #{simple_rnn_forward.1} parent=0 // pred_region
    _
  $region33: #{simple_rnn_forward.1} parent=0 // pred_fallthru
    _
  // Predicated region
  $region34: #{simple_rnn_forward.1} parent=0 // pred_check
    _
  $region35: #{simple_rnn_forward.1} parent=0 // pred_check_branch
    %804 = sbr.rel (0) target = $region37
  $region36: #{simple_rnn_forward.1} parent=0 // pred_region
    _
  $region37: #{simple_rnn_forward.1} parent=0 // pred_fallthru
    _
  // Predicated region
  $region38: #{simple_rnn_forward.1} parent=0 // pred_check
    _
  $region39: #{simple_rnn_forward.1} parent=0 // pred_check_branch
    %806 = sbr.rel (0) target = $region41
  $region40: #{simple_rnn_forward.1} parent=0 // pred_region
    _
  $region41: #{simple_rnn_forward.1} parent=0 // pred_fallthru
    _
  // Predicated region
  $region42: #{simple_rnn_forward.1} parent=0 // pred_check
    _
  $region43: #{simple_rnn_forward.1} parent=0 // pred_check_branch
    %808 = sbr.rel (0) target = $region45
  $region44: #{simple_rnn_forward.1} parent=0 // pred_region
    _
  $region45: #{simple_rnn_forward.1} parent=0 // pred_fallthru
    _

</llo_original>
